<compile_context>
chip_gen: v6e
topology: v6e:2x2x1
jax: 0.10.0
libtpu: 0.0.40
codegen_flags: <defaults>
</compile_context>

<pallas_src>
import functools
import math

import jax
import jax.numpy as jnp
from jax.experimental import pallas as pl
from jax.experimental.pallas import tpu as pltpu

_MIB = 1024 * 1024


def _round_up(a, m):
    return (a + m - 1) // m * m


def _sublane(dtype):
    # sub-32-bit dtypes pack along sublanes: 8 rows for 4B, 16 for 2B, 32 for 1B
    return {4: 8, 2: 16, 1: 32}.get(jnp.dtype(dtype).itemsize, 8)


def _pick_tile(total, target, mult):
    """Largest multiple of `mult` dividing `total` and <= max(target, mult).
    `total` must be a positive multiple of `mult`."""
    t = min(total, (max(target, mult) // mult) * mult)
    while total % t:
        t -= mult
    return t


def _vmem_budget():
    """Generation-aware usable-VMEM budget in bytes (~75% of physical)."""
    try:
        cap = int(pltpu.get_tpu_info().vmem_capacity_bytes)
        if cap <= 0:
            raise ValueError(cap)
    except Exception:
        cap = 64 * _MIB          # conservative (v7x-sized) fallback
    return cap * 3 // 4


# --------------------------------------------------------------------------
# Kernel 1:  rows @ matrix (+ bias)      x2d: (tm, K)   W: (K, Wd)
# --------------------------------------------------------------------------
def _rows_matmul_kernel(x_ref, w_ref, b_ref, o_ref):
    o_ref[...] = (
        jnp.dot(x_ref[...], w_ref[...], preferred_element_type=jnp.float32)
        + b_ref[...]
    ).astype(o_ref.dtype)


# --------------------------------------------------------------------------
# Kernel 2:  out[b] = adj[b] @ rows[b] + bias   (k-tiled contraction, f32 acc)
#   resident=True  -> rows_ref holds the full (Np, Wd) slab; slice with pl.ds
#   resident=False -> rows_ref is the (tk, Wd) k-tile streamed per step
# --------------------------------------------------------------------------
def _adj_matmul_kernel(adj_ref, rows_ref, b_ref, out_ref, acc_ref, *, tk, resident):
    k = pl.program_id(2)

    @pl.when(k == 0)
    def _():
        acc_ref[...] = jnp.zeros_like(acc_ref)

    if resident:
        rows = rows_ref[pl.ds(pl.multiple_of(k * tk, 128), tk), :]
    else:
        rows = rows_ref[...]
    acc_ref[...] += jnp.dot(adj_ref[...], rows, preferred_element_type=jnp.float32)

    @pl.when(k == pl.num_programs(2) - 1)
    def _():
        out_ref[...] = (acc_ref[...] + b_ref[...]).astype(out_ref.dtype)


# --------------------------------------------------------------------------
# pallas_call wrappers
# --------------------------------------------------------------------------
def _rows_matmul(x2d, w, bias2d, out_dtype, *, budget, tm_target):
    M, K = x2d.shape
    Wd = w.shape[1]
    sub = _sublane(x2d.dtype)
    isz = jnp.dtype(x2d.dtype).itemsize
    wsz = jnp.dtype(w.dtype).itemsize
    osz = jnp.dtype(out_dtype).itemsize

    tm = _pick_tile(M, tm_target, sub)
    if M // tm < 2 and M >= 2 * sub:                 # keep both v7x cores busy
        tm = _pick_tile(M, max(M // 2, sub), sub)

    cap = int(budget * 0.8)

    def ws(t):
        return 2 * t * K * isz + 2 * K * Wd * wsz + 2 * t * Wd * osz + 2 * Wd * 4

    while ws(tm) > cap and tm > sub:
        tm = _pick_tile(M, tm // 2, sub)

    vmem_limit = int(min(budget, max(32 * _MIB, ws(tm) + 16 * _MIB)))

    return pl.pallas_call(
        _rows_matmul_kernel,
        out_shape=jax.ShapeDtypeStruct((M, Wd), out_dtype),
        grid_spec=pltpu.PrefetchScalarGridSpec(
            num_scalar_prefetch=0,
            grid=(M // tm,),
            in_specs=[
                pl.BlockSpec((tm, K), lambda i: (i, 0)),   # row tile
                pl.BlockSpec((K, Wd), lambda i: (0, 0)),   # weight (resident)
                pl.BlockSpec((1, Wd), lambda i: (0, 0)),   # bias (f32)
            ],
            out_specs=pl.BlockSpec((tm, Wd), lambda i: (i, 0)),
        ),
        compiler_params=pltpu.CompilerParams(
            dimension_semantics=("parallel",),
            vmem_limit_bytes=vmem_limit),
        cost_estimate=pl.CostEstimate(
            flops=2 * M * K * Wd,
            transcendentals=0,
            bytes_accessed=M * K * isz + K * Wd * wsz + M * Wd * osz + Wd * 4),
    )(x2d, w, bias2d)


def _adj_matmul(adj, rows, bias2d, out_dtype, *, budget, tm_target, tk_target):
    B, Np, _ = adj.shape
    Wd = rows.shape[-1]
    sub = _sublane(adj.dtype)
    asz = jnp.dtype(adj.dtype).itemsize
    rsz = jnp.dtype(rows.dtype).itemsize
    osz = jnp.dtype(out_dtype).itemsize

    tm = _pick_tile(Np, tm_target, sub)
    if B * (Np // tm) < 2 and Np >= 2 * sub:         # >=2 parallel steps (v7x)
        tm = _pick_tile(Np, max(Np // 2, sub), sub)
    tk = _pick_tile(Np, tk_target, 128)

    cap = int(budget * 0.8)

    def fixed_bytes(tm_, tk_):
        return (2 * tm_ * tk_ * asz        # adj blocks (double-buffered)
                + 2 * tm_ * Wd * osz       # out blocks
                + tm_ * Wd * 4             # f32 accumulator scratch
                + 2 * Wd * 4)              # bias

    # Keep rows[b] VMEM-resident across all row/k tiles when it fits the
    # generation's budget (one HBM read per batch instead of Np/tm re-reads).
    resident = fixed_bytes(tm, tk) + 2 * Np * Wd * rsz <= cap
    if not resident:
        while fixed_bytes(tm, tk) + 2 * tk * Wd * rsz > cap and tk > 128:
            tk = _pick_tile(Np, tk // 2, 128)
        while fixed_bytes(tm, tk) + 2 * tk * Wd * rsz > cap and tm > sub:
            tm = _pick_tile(Np, tm // 2, sub)

    ws = fixed_bytes(tm, tk) + (2 * Np if resident else 2 * tk) * Wd * rsz
    vmem_limit = int(min(budget, max(32 * _MIB, ws + 16 * _MIB)))

    if resident:
        rows_spec = pl.BlockSpec((None, Np, Wd), lambda b, i, k: (b, 0, 0))
        rows_read_bytes = B * Np * Wd * rsz
    else:
        rows_spec = pl.BlockSpec((None, tk, Wd), lambda b, i, k: (b, k, 0))
        rows_read_bytes = B * (Np // tm) * Np * Wd * rsz

    kernel = functools.partial(_adj_matmul_kernel, tk=tk, resident=resident)

    return pl.pallas_call(
        kernel,
        out_shape=jax.ShapeDtypeStruct((B, Np, Wd), out_dtype),
        grid_spec=pltpu.PrefetchScalarGridSpec(
            num_scalar_prefetch=0,
            grid=(B, Np // tm, Np // tk),
            in_specs=[
                pl.BlockSpec((None, tm, tk), lambda b, i, k: (b, i, k)),
                rows_spec,
                pl.BlockSpec((1, Wd), lambda b, i, k: (0, 0)),
            ],
            out_specs=pl.BlockSpec((None, tm, Wd), lambda b, i, k: (b, i, 0)),
            scratch_shapes=[pltpu.VMEM((tm, Wd), jnp.float32)],
        ),
        compiler_params=pltpu.CompilerParams(
            dimension_semantics=("parallel", "parallel", "arbitrary"),
            vmem_limit_bytes=vmem_limit),
        cost_estimate=pl.CostEstimate(
            flops=2 * B * Np * Np * Wd,
            transcendentals=0,
            bytes_accessed=(B * Np * Np * asz + rows_read_bytes
                            + B * Np * Wd * osz + Wd * 4)),
    )(adj, rows, bias2d)


# --------------------------------------------------------------------------
# Public wrapper
# --------------------------------------------------------------------------
def dense_graph_conv(x, adj, weight, bias, *, compute_dtype=jnp.bfloat16,
                     tm=512, tk=1024, tm_rows=1024):
    """DenseGraphConv forward: (adj @ x) @ W + b.

    x: (B, N, F) or (N, F); adj: (B, N, N) or (N, N); weight: (F, C); bias: (C,).
    adj / x / W (and the intermediate) are streamed in `compute_dtype`
    (default bf16); all matmul accumulation is float32.  Pass
    compute_dtype=jnp.float32 (or None) for full-precision streaming.
    """
    if x.ndim == 2:
        x = x[None]
    if adj.ndim == 2:
        adj = adj[None]
    B, N, F = x.shape
    C = weight.shape[1]
    out_dtype = x.dtype

    if compute_dtype is not None:
        x = x.astype(compute_dtype)
        adj = adj.astype(compute_dtype)
        weight = weight.astype(compute_dtype)
    in_dtype = x.dtype

    budget = _vmem_budget()

    # Pad N only to a multiple of 128 (lane-dense adj / rows tiles, small waste).
    Np = _round_up(N, 128)
    if Np != N:
        x = jnp.pad(x, ((0, 0), (0, Np - N), (0, 0)))
        adj = jnp.pad(adj, ((0, 0), (0, Np - N), (0, Np - N)))

    Cp = _round_up(C, 128)

    if C <= F:
        # Reassociate: out = adj @ (x @ W) + b   (dominant term at width Cp <= F)
        w_p = jnp.pad(weight, ((0, 0), (0, Cp - C)))
        bias2d = jnp.pad(bias, (0, Cp - C)).reshape(1, Cp).astype(jnp.float32)
        zero_b = jnp.zeros((1, Cp), jnp.float32)

        xw = _rows_matmul(x.reshape(B * Np, F), w_p, zero_b, in_dtype,
                          budget=budget, tm_target=tm_rows)
        out_p = _adj_matmul(adj, xw.reshape(B, Np, Cp), bias2d, out_dtype,
                            budget=budget, tm_target=tm, tk_target=tk)
        return out_p[:, :N, :C]
    else:
        # C > F: keep the original order out = (adj @ x) @ W + b.
        Fp = _round_up(F, 128)
        x_p = jnp.pad(x, ((0, 0), (0, 0), (0, Fp - F))) if Fp != F else x
        zero_b = jnp.zeros((1, Fp), jnp.float32)

        ax = _adj_matmul(adj, x_p, zero_b, in_dtype,
                         budget=budget, tm_target=tm, tk_target=tk)
        w_p = jnp.pad(weight, ((0, Fp - F), (0, Cp - C)))
        bias2d = jnp.pad(bias, (0, Cp - C)).reshape(1, Cp).astype(jnp.float32)
        out2d = _rows_matmul(ax.reshape(B * Np, Fp), w_p, bias2d, out_dtype,
                             budget=budget, tm_target=tm_rows)
        return out2d.reshape(B, Np, Cp)[:, :N, :C]


def init_params(key, in_channels, out_channels):
    # Matches torch_geometric `uniform(size, tensor)`: U(-1/sqrt(size), 1/sqrt(size))
    bound = 1.0 / math.sqrt(in_channels)
    weight = jax.random.uniform(
        key, (in_channels, out_channels), dtype=jnp.float32,
        minval=-bound, maxval=bound)
    bias = jnp.zeros((out_channels,), dtype=jnp.float32)  # zeros(self.bias)
    return weight, bias


if __name__ == "__main__":
    # TODO(synk): the module's optional `mask` argument is unused in its
    # forward, so it is intentionally not implemented here.

    run_f32 = jax.jit(functools.partial(dense_graph_conv, compute_dtype=jnp.float32))
    run_bf16 = jax.jit(dense_graph_conv)          # default bf16 streaming

    # ---- 1) small graph, strict f32 check (C <= F, reassociated path) ------
    B, N, F, C = 2, 8, 32, 16
    kx, kadj, kw = jax.random.split(jax.random.PRNGKey(0), 3)
    x = jax.random.normal(kx, (B, N, F), dtype=jnp.float32)
    a = jax.random.uniform(kadj, (B, N, N), dtype=jnp.float32)
    adj = (a > 0.5).astype(jnp.float32) + jnp.eye(N, dtype=jnp.float32)[None]
    weight, bias = init_params(kw, F, C)

    out = jax.block_until_ready(run_f32(x, adj, weight, bias))
    ref = jnp.matmul(jnp.matmul(adj, x), weight) + bias
    assert out.shape == (B, N, C)
    assert jnp.allclose(out, ref, atol=1e-4, rtol=1e-4), "mismatch (small f32 case)"

    # ---- 2) mid-size graph, default bf16 streaming (tiled / padded path) ---
    B2, N2, F2, C2 = 1, 600, 64, 48
    kx2, kadj2, kw2, kb2 = jax.random.split(jax.random.PRNGKey(1), 4)
    x2 = jax.random.normal(kx2, (B2, N2, F2), dtype=jnp.float32)
    a2 = jax.random.uniform(kadj2, (B2, N2, N2), dtype=jnp.float32)
    adj2 = (a2 > 0.9).astype(jnp.float32) + jnp.eye(N2, dtype=jnp.float32)[None]
    w2 = jax.random.normal(kw2, (F2, C2), dtype=jnp.float32) * 0.1
    b2 = jax.random.normal(kb2, (C2,), dtype=jnp.float32)

    out2 = jax.block_until_ready(run_bf16(x2, adj2, w2, b2))
    ref2 = jnp.matmul(jnp.matmul(adj2, x2), w2) + b2
    assert out2.shape == (B2, N2, C2)
    assert jnp.allclose(out2, ref2, atol=0.3, rtol=0.05), "mismatch (bf16 case)"

    # ---- 3) C > F path (original (adj@x)@W order), strict f32 --------------
    B3, N3, F3, C3 = 2, 200, 16, 96
    kx3, kadj3, kw3, kb3 = jax.random.split(jax.random.PRNGKey(2), 4)
    x3 = jax.random.normal(kx3, (B3, N3, F3), dtype=jnp.float32)
    a3 = jax.random.uniform(kadj3, (B3, N3, N3), dtype=jnp.float32)
    adj3 = (a3 > 0.8).astype(jnp.float32) + jnp.eye(N3, dtype=jnp.float32)[None]
    w3 = jax.random.normal(kw3, (F3, C3), dtype=jnp.float32) * 0.1
    b3 = jax.random.normal(kb3, (C3,), dtype=jnp.float32)

    out3 = jax.block_until_ready(run_f32(x3, adj3, w3, b3))
    ref3 = jnp.matmul(jnp.matmul(adj3, x3), w3) + b3
    assert out3.shape == (B3, N3, C3)
    assert jnp.allclose(out3, ref3, atol=1e-3, rtol=1e-3), "mismatch (C>F case)"

    print("KERNEL_OK")
</pallas_src>

<mosaic_0001>
module attributes {stable_mosaic.version = 11 : i64} {
  func.func @_adj_matmul_kernel(%arg0: i32, %arg1: i32, %arg2: i32, %arg3: memref<1x128x128xf32, #tpu.memory_space<vmem>>, %arg4: memref<1x128x128xf32, #tpu.memory_space<vmem>>, %arg5: memref<1x128xf32, #tpu.memory_space<vmem>>, %arg6: memref<1x128x128xf32, #tpu.memory_space<vmem>>, %arg7: memref<128x128xf32, #tpu.memory_space<vmem>>) attributes {dimension_semantics = [#tpu.dimension_semantics<parallel>, #tpu.dimension_semantics<parallel>, #tpu.dimension_semantics<arbitrary>], iteration_bounds = array<i64: 2, 1, 1>, scalar_prefetch = 0 : i64, scratch_operands = 1 : i64, tpu.core_type = #tpu.core_type<tc>, window_params = [{transform_indices = @transform_0, window_bounds = array<i64: 1, 128, 128>}, {transform_indices = @transform_1, window_bounds = array<i64: 1, 128, 128>}, {pipeline_mode = #tpu.pipeline_mode<synchronous>, transform_indices = @transform_2, window_bounds = array<i64: 1, 128>}, {transform_indices = @transform_3, window_bounds = array<i64: 1, 128, 128>}]} {
    %c0_i32 = arith.constant 0 : i32
    %0 = arith.cmpi eq, %arg2, %c0_i32 : i32
    %1 = arith.extui %0 : i1 to i32
    %c0_i32_0 = arith.constant 0 : i32
    %2 = arith.cmpi ne, %1, %c0_i32_0 : i32
    scf.if %2 {
      %cst_11 = arith.constant 0.000000e+00 : f32
      %17 = vector.broadcast %cst_11 : f32 to vector<128x128xf32>
      %c0_12 = arith.constant 0 : index
      %c0_13 = arith.constant 0 : index
      %18 = vector.load %arg7[%c0_12, %c0_13] : memref<128x128xf32, #tpu.memory_space<vmem>>, vector<128x128xf32>
      tpu.vector_store %arg7[%c0_12, %c0_13], %17 {strides = array<i32>} : memref<128x128xf32, #tpu.memory_space<vmem>>, vector<128x128xf32>,
    } else {
    }
    %c128_i32 = arith.constant 128 : i32
    %3 = arith.muli %arg2, %c128_i32 : i32
    %4 = tpu.assume_multiple %3, 128 : i32
    %c0 = arith.constant 0 : index
    %5 = arith.index_cast %4 : i32 to index
    %c0_1 = arith.constant 0 : index
    %6 = vector.load %arg4[%c0, %5, %c0_1] : memref<1x128x128xf32, #tpu.memory_space<vmem>>, vector<1x128x128xf32>
    %7 = vector.shape_cast %6 : vector<1x128x128xf32> to vector<128x128xf32>
    %c0_2 = arith.constant 0 : index
    %c0_3 = arith.constant 0 : index
    %8 = vector.load %arg7[%c0_2, %c0_3] : memref<128x128xf32, #tpu.memory_space<vmem>>, vector<128x128xf32>
    %c0_4 = arith.constant 0 : index
    %c0_5 = arith.constant 0 : index
    %c0_6 = arith.constant 0 : index
    %9 = vector.load %arg3[%c0_4, %c0_5, %c0_6] : memref<1x128x128xf32, #tpu.memory_space<vmem>>, vector<1x128x128xf32>
    %10 = vector.shape_cast %9 : vector<1x128x128xf32> to vector<128x128xf32>
    %cst = arith.constant dense<0.000000e+00> : vector<128x128xf32>
    %11 = tpu.matmul %10, %7, %cst {dimension_numbers = #tpu.dot_dimension_numbers<[1], [0], [0], [1], [0, 0, 1, 1], [], []>} : vector<128x128xf32>, vector<128x128xf32>, vector<128x128xf32> -> vector<128x128xf32>
    %12 = arith.addf %8, %11 : vector<128x128xf32>
    %c0_7 = arith.constant 0 : index
    %c0_8 = arith.constant 0 : index
    %13 = vector.load %arg7[%c0_7, %c0_8] : memref<128x128xf32, #tpu.memory_space<vmem>>, vector<128x128xf32>
    tpu.vector_store %arg7[%c0_7, %c0_8], %12 {strides = array<i32>} : memref<128x128xf32, #tpu.memory_space<vmem>>, vector<128x128xf32>,
    %c0_i32_9 = arith.constant 0 : i32
    %14 = arith.cmpi eq, %arg2, %c0_i32_9 : i32
    %15 = arith.extui %14 : i1 to i32
    %c0_i32_10 = arith.constant 0 : i32
    %16 = arith.cmpi ne, %15, %c0_i32_10 : i32
    scf.if %16 {
      %c0_11 = arith.constant 0 : index
      %c0_12 = arith.constant 0 : index
      %17 = vector.load %arg7[%c0_11, %c0_12] : memref<128x128xf32, #tpu.memory_space<vmem>>, vector<128x128xf32>
      %c0_13 = arith.constant 0 : index
      %c0_14 = arith.constant 0 : index
      %18 = vector.load %arg5[%c0_13, %c0_14] : memref<1x128xf32, #tpu.memory_space<vmem>>, vector<1x128xf32>
      %19 = vector.broadcast %18 : vector<1x128xf32> to vector<128x128xf32>
      %20 = arith.addf %17, %19 : vector<128x128xf32>
      %c0_15 = arith.constant 0 : index
      %c0_16 = arith.constant 0 : index
      %c0_17 = arith.constant 0 : index
      %21 = vector.load %arg6[%c0_15, %c0_16, %c0_17] : memref<1x128x128xf32, #tpu.memory_space<vmem>>, vector<1x128x128xf32>
      %22 = vector.shape_cast %21 : vector<1x128x128xf32> to vector<128x128xf32>
      %23 = vector.shape_cast %20 : vector<128x128xf32> to vector<1x128x128xf32>
      tpu.vector_store %arg6[%c0_15, %c0_16, %c0_17], %23 {strides = array<i32>} : memref<1x128x128xf32, #tpu.memory_space<vmem>>, vector<1x128x128xf32>,
    } else {
    }
    return
  }
  func.func @transform_0(%arg0: i32, %arg1: i32, %arg2: i32) -> (i32, i32, i32) {
    %c0_i32 = arith.constant 0 : i32
    return %arg0, %arg1, %arg2 : i32, i32, i32
  }
  func.func @transform_1(%arg0: i32, %arg1: i32, %arg2: i32) -> (i32, i32, i32) {
    %c0_i32 = arith.constant 0 : i32
    %c0_i32_0 = arith.constant 0 : i32
    %c0_i32_1 = arith.constant 0 : i32
    return %arg0, %c0_i32, %c0_i32_0 : i32, i32, i32
  }
  func.func @transform_2(%arg0: i32, %arg1: i32, %arg2: i32) -> (i32, i32) {
    %c0_i32 = arith.constant 0 : i32
    %c0_i32_0 = arith.constant 0 : i32
    %c0_i32_1 = arith.constant 0 : i32
    return %c0_i32, %c0_i32_0 : i32, i32
  }
  func.func @transform_3(%arg0: i32, %arg1: i32, %arg2: i32) -> (i32, i32, i32) {
    %c0_i32 = arith.constant 0 : i32
    %c0_i32_0 = arith.constant 0 : i32
    return %arg0, %arg1, %c0_i32 : i32, i32, i32
  }
}

module attributes {stable_mosaic.version = 11 : i64} {
  func.func @_rows_matmul_kernel(%arg0: i32, %arg1: memref<128x32xf32, #tpu.memory_space<vmem>>, %arg2: memref<32x128xf32, #tpu.memory_space<vmem>>, %arg3: memref<1x128xf32, #tpu.memory_space<vmem>>, %arg4: memref<128x128xf32, #tpu.memory_space<vmem>>) attributes {dimension_semantics = [#tpu.dimension_semantics<parallel>], iteration_bounds = array<i64: 2>, scalar_prefetch = 0 : i64, scratch_operands = 0 : i64, tpu.core_type = #tpu.core_type<tc>, window_params = [{transform_indices = @transform_0, window_bounds = array<i64: 128, 32>}, {pipeline_mode = #tpu.pipeline_mode<synchronous>, transform_indices = @transform_1, window_bounds = array<i64: 32, 128>}, {pipeline_mode = #tpu.pipeline_mode<synchronous>, transform_indices = @transform_2, window_bounds = array<i64: 1, 128>}, {transform_indices = @transform_3, window_bounds = array<i64: 128, 128>}]} {
    %c0 = arith.constant 0 : index
    %c0_0 = arith.constant 0 : index
    %0 = vector.load %arg1[%c0, %c0_0] : memref<128x32xf32, #tpu.memory_space<vmem>>, vector<128x32xf32>
    %c0_1 = arith.constant 0 : index
    %c0_2 = arith.constant 0 : index
    %1 = vector.load %arg2[%c0_1, %c0_2] : memref<32x128xf32, #tpu.memory_space<vmem>>, vector<32x128xf32>
    %cst = arith.constant dense<0.000000e+00> : vector<128x128xf32>
    %2 = tpu.matmul %0, %1, %cst {dimension_numbers = #tpu.dot_dimension_numbers<[1], [0], [0], [1], [0, 0, 1, 1], [], []>} : vector<128x32xf32>, vector<32x128xf32>, vector<128x128xf32> -> vector<128x128xf32>
    %c0_3 = arith.constant 0 : index
    %c0_4 = arith.constant 0 : index
    %3 = vector.load %arg3[%c0_3, %c0_4] : memref<1x128xf32, #tpu.memory_space<vmem>>, vector<1x128xf32>
    %4 = vector.broadcast %3 : vector<1x128xf32> to vector<128x128xf32>
    %5 = arith.addf %2, %4 : vector<128x128xf32>
    %c0_5 = arith.constant 0 : index
    %c0_6 = arith.constant 0 : index
    %6 = vector.load %arg4[%c0_5, %c0_6] : memref<128x128xf32, #tpu.memory_space<vmem>>, vector<128x128xf32>
    tpu.vector_store %arg4[%c0_5, %c0_6], %5 {strides = array<i32>} : memref<128x128xf32, #tpu.memory_space<vmem>>, vector<128x128xf32>,
    return
  }
  func.func @transform_0(%arg0: i32) -> (i32, i32) {
    %c0_i32 = arith.constant 0 : i32
    %c0_i32_0 = arith.constant 0 : i32
    return %arg0, %c0_i32 : i32, i32
  }
  func.func @transform_1(%arg0: i32) -> (i32, i32) {
    %c0_i32 = arith.constant 0 : i32
    %c0_i32_0 = arith.constant 0 : i32
    %c0_i32_1 = arith.constant 0 : i32
    return %c0_i32, %c0_i32_0 : i32, i32
  }
  func.func @transform_2(%arg0: i32) -> (i32, i32) {
    %c0_i32 = arith.constant 0 : i32
    %c0_i32_0 = arith.constant 0 : i32
    %c0_i32_1 = arith.constant 0 : i32
    return %c0_i32, %c0_i32_0 : i32, i32
  }
  func.func @transform_3(%arg0: i32) -> (i32, i32) {
    %c0_i32 = arith.constant 0 : i32
    %c0_i32_0 = arith.constant 0 : i32
    return %arg0, %c0_i32 : i32, i32
  }
}

</mosaic_0001>

<llo_original>
// kernel: dense_graph_conv.2
$region0: #{dense_graph_conv.2}
  #allocation0 [shape = 'u32[]', space=smem, size = 0x4, offset = 0x4, fixed_abs, tag = 'smem constant byte address 0x4 - core index']
  #allocation1 [shape = 'u32[144,128]{1,0:T(1,128)}', space=vmem, size = 0x12000, scoped, tag = 'internal scratch']
  %s0 = inlined_call_operand.vmem [shape: f32[256,32], index: 0, kind: input, shape index: {}]
  %s1 = inlined_call_operand.vmem [shape: f32[32,128], index: 1, kind: input, shape index: {}]
  %s2 = inlined_call_operand.vmem [shape: f32[1,128], index: 2, kind: input, shape index: {}]
  %s3 = inlined_call_operand.vmem [shape: f32[256,128], index: 3, kind: output, shape index: {}]
  %s4 = sld [smem:[#allocation0]]
  $region45: #{dense_graph_conv.2} parent=0
    _
  %s6 = ssub.s32 1, %s4
  %s7 = scalar_select 0, %s6, %s4
  loop: start=0, step=1, limit=4
  $region2: #{dense_graph_conv.2} parent=0 // loop_pre_header
    _
  $region3: #{dense_graph_conv.2} parent=0 // loop_header
    %s9 = sphi 0, %s13
    %p10 = scmp.ge.s32.totalorder %s9, 4
    %s19 = sphi 0, %s21
    %s22 = sphi 0, %s19
    %s23 = sphi 0, %s22
    %s39 = sphi 0, %s23
    %s43 = sphi 0, %s43
    %s45 = sphi 0, %s43
    %s46 = sphi 0, %s45
    %s60 = sphi 0, %s46
    %s64 = sphi 0, %s64
    %s66 = sphi 0, %s64
    %s67 = sphi 0, %s66
    %s81 = sphi 0, %s67
    %s87 = sphi 0, %s89
    %s90 = sphi 0, %s87
    %s91 = sphi 0, %s90
    %s107 = sphi 0, %s91
  $region4: #{dense_graph_conv.2} parent=0 // loop_header_branch
    %12 = sbr.rel (%p10) target = $region8
  $region5: #{dense_graph_conv.2} parent=0 // loop_body
    %s14 = ssub.s32 %s9, 1
    %s15 = ssub.s32 %s9, 2
    %s16 = sadd.s32 %s9, 1
    %s17 = ssub.s32 %s9, %s16
    %p18 = scmp.eq.s32.totalorder %s17, 0
    %s20 = sadd.s32 %s19, 1
    %s21 = scalar_select %p18, %s19, %s20
    %p24 = pneg %p18
    %p25 = scmp.eq.s32.totalorder %s9, 1
    %p26 = por %p24, %p25
    %p27 = scmp.ne.s32.totalorder %s19, %s22
    %p28 = scmp.eq.s32.totalorder %s9, 0
    %p29 = por %p27, %p28
    %p30 = scmp.ne.s32.totalorder %s19, %s22
    %p31 = scmp.eq.s32.totalorder %s14, 1
    %p32 = por %p30, %p31
    %p33 = scmp.ne.s32.totalorder %s22, %s23
    %p34 = scmp.eq.s32.totalorder %s14, 0
    %p35 = por %p33, %p34
    %p36 = scmp.ne.s32.totalorder %s22, %s23
    %p37 = scmp.eq.s32.totalorder %s15, 1
    %p38 = por %p36, %p37
    %p40 = scmp.ne.s32.totalorder %s23, %s39
    %p41 = scmp.eq.s32.totalorder %s15, 0
    %p42 = por %p40, %p41
    %s44 = sadd.s32 %s43, 1
    %p47 = scmp.eq.s32.totalorder %s9, 1
    %p48 = scmp.ne.s32.totalorder %s43, %s45
    %p49 = scmp.eq.s32.totalorder %s9, 0
    %p50 = por %p48, %p49
    %p51 = scmp.ne.s32.totalorder %s43, %s45
    %p52 = scmp.eq.s32.totalorder %s14, 1
    %p53 = por %p51, %p52
    %p54 = scmp.ne.s32.totalorder %s45, %s46
    %p55 = scmp.eq.s32.totalorder %s14, 0
    %p56 = por %p54, %p55
    %p57 = scmp.ne.s32.totalorder %s45, %s46
    %p58 = scmp.eq.s32.totalorder %s15, 1
    %p59 = por %p57, %p58
    %p61 = scmp.ne.s32.totalorder %s46, %s60
    %p62 = scmp.eq.s32.totalorder %s15, 0
    %p63 = por %p61, %p62
    %s65 = sadd.s32 %s64, 1
    %p68 = scmp.eq.s32.totalorder %s9, 1
    %p69 = scmp.ne.s32.totalorder %s64, %s66
    %p70 = scmp.eq.s32.totalorder %s9, 0
    %p71 = por %p69, %p70
    %p72 = scmp.ne.s32.totalorder %s64, %s66
    %p73 = scmp.eq.s32.totalorder %s14, 1
    %p74 = por %p72, %p73
    %p75 = scmp.ne.s32.totalorder %s66, %s67
    %p76 = scmp.eq.s32.totalorder %s14, 0
    %p77 = por %p75, %p76
    %p78 = scmp.ne.s32.totalorder %s66, %s67
    %p79 = scmp.eq.s32.totalorder %s15, 1
    %p80 = por %p78, %p79
    %p82 = scmp.ne.s32.totalorder %s67, %s81
    %p83 = scmp.eq.s32.totalorder %s15, 0
    %p84 = por %p82, %p83
    %s85 = ssub.s32 %s9, %s16
    %p86 = scmp.eq.s32.totalorder %s85, 0
    %s88 = sadd.s32 %s87, 1
    %s89 = scalar_select %p86, %s87, %s88
    %p92 = pneg %p86
    %p93 = scmp.eq.s32.totalorder %s9, 1
    %p94 = por %p92, %p93
    %p95 = scmp.ne.s32.totalorder %s87, %s90
    %p96 = scmp.eq.s32.totalorder %s9, 0
    %p97 = por %p95, %p96
    %p98 = scmp.ne.s32.totalorder %s87, %s90
    %p99 = scmp.eq.s32.totalorder %s14, 1
    %p100 = por %p98, %p99
    %p101 = scmp.ne.s32.totalorder %s90, %s91
    %p102 = scmp.eq.s32.totalorder %s14, 0
    %p103 = por %p101, %p102
    %p104 = scmp.ne.s32.totalorder %s90, %s91
    %p105 = scmp.eq.s32.totalorder %s15, 1
    %p106 = por %p104, %p105
    %p108 = scmp.ne.s32.totalorder %s91, %s107
    %p109 = scmp.eq.s32.totalorder %s15, 0
    %p110 = por %p108, %p109
    %p111 = scmp.le.s32.totalorder 1, %s9
    %p112 = scmp.lt.s32.totalorder %s9, 3
    %p113 = pnand %p111, %p112
    %p114 = pneg %p113
    // Predicated region
    $region9: #{dense_graph_conv.2} parent=5 // pred_check
      _
    $region10: #{dense_graph_conv.2} parent=5 // pred_check_branch
      %116 = sbr.rel (%p113) target = $region12
    $region11: #{dense_graph_conv.2} parent=5 // pred_region
      %s117 = ssub.s32 %s9, 1
      // Predicated region
      $region13: #{dense_graph_conv.2} parent=11 // pred_check
        %p118 = pneg %p56
      $region14: #{dense_graph_conv.2} parent=11 // pred_check_branch
        %120 = sbr.rel (%p118) target = $region16
      $region15: #{dense_graph_conv.2} parent=11 // pred_region
        _
      $region16: #{dense_graph_conv.2} parent=11 // pred_fallthru
        _
      // Predicated region
      $region17: #{dense_graph_conv.2} parent=11 // pred_check
        %p121 = pneg %p77
      $region18: #{dense_graph_conv.2} parent=11 // pred_check_branch
        %123 = sbr.rel (%p121) target = $region20
      $region19: #{dense_graph_conv.2} parent=11 // pred_region
        _
      $region20: #{dense_graph_conv.2} parent=11 // pred_fallthru
        _
    $region12: #{dense_graph_conv.2} parent=5 // pred_fallthru
      _
    %p124 = scmp.lt.s32.totalorder %s9, 2
    // Predicated region
    $region21: #{dense_graph_conv.2} parent=5 // pred_check
      %p125 = pneg %p124
    $region22: #{dense_graph_conv.2} parent=5 // pred_check_branch
      %127 = sbr.rel (%p125) target = $region24
    $region23: #{dense_graph_conv.2} parent=5 // pred_region
      // Predicated region
      $region25: #{dense_graph_conv.2} parent=23 // pred_check
        %p128 = pneg %p29
      $region26: #{dense_graph_conv.2} parent=23 // pred_check_branch
        %130 = sbr.rel (%p128) target = $region28
      $region27: #{dense_graph_conv.2} parent=23 // pred_region
        %s131 = smul.u32 16, %s9
        %p132 = scmp.lt.s32.totalorder %s131, 31
        %s133 = scalar_select %p132, %s131, 31
        %s134 = smul.addr %s133, 8
        %s135 = scalar_lea.vmem %s0, %s134
        %s136 = smul.u32 16, %s9
      $region28: #{dense_graph_conv.2} parent=23 // pred_fallthru
        _
    $region24: #{dense_graph_conv.2} parent=5 // pred_fallthru
      _
    %p137 = scmp.le.s32.totalorder 1, %s9
    %p138 = scmp.lt.s32.totalorder %s9, 3
    %p139 = pnand %p137, %p138
    %p140 = pneg %p139
    // Predicated region
    $region29: #{dense_graph_conv.2} parent=5 // pred_check
      _
    $region30: #{dense_graph_conv.2} parent=5 // pred_check_branch
      %142 = sbr.rel (%p139) target = $region32
    $region31: #{dense_graph_conv.2} parent=5 // pred_region
      %s143 = ssub.s32 %s9, 1
      %s144 = smul.u32 16, %s14
      %p145 = scmp.lt.s32.totalorder %s144, 31
      %s146 = scalar_select %p145, %s144, 31
      %s147 = smul.addr %s146, 8
      %s148 = scalar_lea.vmem %s0, %s147
      %p149 = pneg %p35
      %p150 = pneg %p32
      %p151 = pneg %p56
      %p152 = pneg %p53
      %p153 = pneg %p77
      %p154 = pneg %p74
      %p155 = pneg %p103
      %p156 = pneg %p100
      %s157 = smul.u32 16, %s14
      %p158 = scmp.lt.s32.totalorder %s157, 31
      %s159 = scalar_select %p158, %s157, 31
      %s160 = smul.addr %s159, 8
      %s161 = scalar_lea.vmem %s3, %s160
      %s162 = smul.u32 16, %s14
      %p163 = scmp.lt.s32.totalorder %s162, 31
      %s164 = scalar_select %p163, %s162, 31
      %s165 = smul.addr %s164, 8
      %s166 = scalar_lea.vmem %s0, %s165
      %s167 = smul.u32 16, %s14
      %s168 = smul.u32 16, %s14
      %p169 = scmp.lt.s32.totalorder %s168, 31
      %s170 = scalar_select %p169, %s168, 31
      %s171 = smul.addr %s170, 8
      %s172 = scalar_lea.vmem %s3, %s171
      %s173 = smul.u32 16, %s14
      %v174 = vld [vmem:[%s166] sm:$0xff]
      %v175 = vld [vmem:[%s166 + $0x8] sm:$0xff]
      %v176 = vld [vmem:[%s166 + $0x10] sm:$0xff]
      %v177 = vld [vmem:[%s166 + $0x18] sm:$0xff]
      %v178 = vld [vmem:[%s166 + $0x20] sm:$0xff]
      %v179 = vld [vmem:[%s166 + $0x28] sm:$0xff]
      %v180 = vld [vmem:[%s166 + $0x30] sm:$0xff]
      %v181 = vld [vmem:[%s166 + $0x38] sm:$0xff]
      %v182 = vld [vmem:[%s166 + $0x40] sm:$0xff]
      %v183 = vld [vmem:[%s166 + $0x48] sm:$0xff]
      %v184 = vld [vmem:[%s166 + $0x50] sm:$0xff]
      %v185 = vld [vmem:[%s166 + $0x58] sm:$0xff]
      %v186 = vld [vmem:[%s166 + $0x60] sm:$0xff]
      %v187 = vld [vmem:[%s166 + $0x68] sm:$0xff]
      %v188 = vld [vmem:[%s166 + $0x70] sm:$0xff]
      %v189 = vld [vmem:[%s166 + $0x78] sm:$0xff]
      %v190 = vld [vmem:[%s1] sm:$0xff]
      %v191 = vld [vmem:[%s1 + $0x8] sm:$0xff]
      %v192 = vld [vmem:[%s1 + $0x10] sm:$0xff]
      %v193 = vld [vmem:[%s1 + $0x18] sm:$0xff]
      %v194 = vld [vmem:[%s2] sm:$0x1]
      %v196 = vlaneseq
      %v197 = vshrl.u32 %v196, 7
      %v198 = vsub.s32 0, %v197
      %v199 = vrot.slane %v194, %v198
      %vm201 = vcmask 261120
      %v203 = vsel %vm201, %v174, 0
      %v206 = vsel %vm201, %v175, 0
      %v209 = vsel %vm201, %v176, 0
      %v212 = vsel %vm201, %v177, 0
      %v215 = vsel %vm201, %v178, 0
      %v218 = vsel %vm201, %v179, 0
      %v221 = vsel %vm201, %v180, 0
      %v224 = vsel %vm201, %v181, 0
      %v227 = vsel %vm201, %v182, 0
      %v230 = vsel %vm201, %v183, 0
      %v233 = vsel %vm201, %v184, 0
      %v236 = vsel %vm201, %v185, 0
      %v239 = vsel %vm201, %v186, 0
      %v242 = vsel %vm201, %v187, 0
      %v245 = vsel %vm201, %v188, 0
      %v248 = vsel %vm201, %v189, 0
      %250 = vmatprep.subr.mxu0 0.0
      %251 = vmatpush1.msra.mxu0 0.0
      %252 = vmatprep.subr.mxu0 0.0
      %253 = vmatpush1.msra.mxu0 0.0
      %254 = vmatprep.subr.mxu0 0.0
      %255 = vmatpush1.msra.mxu0 0.0
      %256 = vmatprep.subr.mxu0 0.0
      %257 = vmatpush1.msra.mxu0 0.0
      %258 = vmatprep.subr.mxu0 0.0
      %259 = vmatpush1.msra.mxu0 0.0
      %260 = vmatprep.subr.mxu0 0.0
      %261 = vmatpush1.msra.mxu0 0.0
      %262 = vmatprep.subr.mxu0 0.0
      %263 = vmatpush1.msra.mxu0 0.0
      %264 = vmatprep.subr.mxu0 0.0
      %265 = vmatpush1.msra.mxu0 0.0
      %266 = vmatprep.subr.mxu0 0.0
      %267 = vmatpush1.msra.mxu0 0.0
      %268 = vmatprep.subr.mxu0 0.0
      %269 = vmatpush1.msra.mxu0 0.0
      %270 = vmatprep.subr.mxu0 0.0
      %271 = vmatpush1.msra.mxu0 0.0
      %272 = vmatprep.subr.mxu0 0.0
      %273 = vmatpush1.msra.mxu0 0.0
      %274 = vmatprep.subr.mxu0 0.0
      %275 = vmatpush1.msra.mxu0 %v193
      %276 = vmatprep.subr.mxu0 0.0
      %277 = vmatpush1.msra.mxu0 %v192
      %278 = vmatprep.subr.mxu0 0.0
      %279 = vmatpush1.msra.mxu0 %v191
      %280 = vmatprep.subr.mxu0 0.0
      %281 = vmatpush1.msra.mxu0 %v190
      %282 = vmatprep.subr.mxu0 0.0
      %283 = vmatpush2.msra.mxu0 0.0
      %284 = vmatprep.subr.mxu0 0.0
      %285 = vmatpush2.msra.mxu0 0.0
      %286 = vmatprep.subr.mxu0 0.0
      %287 = vmatpush2.msra.mxu0 0.0
      %288 = vmatprep.subr.mxu0 0.0
      %289 = vmatpush2.msra.mxu0 0.0
      %290 = vmatprep.subr.mxu0 0.0
      %291 = vmatpush2.msra.mxu0 0.0
      %292 = vmatprep.subr.mxu0 0.0
      %293 = vmatpush2.msra.mxu0 0.0
      %294 = vmatprep.subr.mxu0 0.0
      %295 = vmatpush2.msra.mxu0 0.0
      %296 = vmatprep.subr.mxu0 0.0
      %297 = vmatpush2.msra.mxu0 0.0
      %298 = vmatprep.subr.mxu0 0.0
      %299 = vmatpush2.msra.mxu0 0.0
      %300 = vmatprep.subr.mxu0 0.0
      %301 = vmatpush2.msra.mxu0 0.0
      %302 = vmatprep.subr.mxu0 0.0
      %303 = vmatpush2.msra.mxu0 0.0
      %304 = vmatprep.subr.mxu0 0.0
      %305 = vmatpush2.msra.mxu0 0.0
      %306 = vmatprep.subr.mxu0 0.0
      %307 = vmatpush2.msra.mxu0 0.0
      %308 = vmatprep.subr.mxu0 0.0
      %309 = vmatpush2.msra.mxu0 0.0
      %310 = vmatprep.subr.mxu0 0.0
      %311 = vmatpush2.msra.mxu0 0.0
      %312 = vmatprep.subr.mxu0 0.0
      %313 = vmatpush2.msra.mxu0 0.0
      %314 = vmatprep.mubr.f32.mxu0 0.0
      %315 = vmatmul.mubr.f32.gmra.mxu0 %v203
      %v316 = vpop.f32.mrf.mxu0
      %v317 = vadd.f32 %v199, %v316
      %v318 = vpop.f32.mrf.mxu0
      %319 = vmatprep.mubr.f32.mxu0 0.0
      %320 = vmatmul.mubr.f32.gmra.mxu0 %v206
      %v321 = vpop.f32.mrf.mxu0
      %v322 = vadd.f32 %v199, %v321
      %v323 = vpop.f32.mrf.mxu0
      %324 = vmatprep.mubr.f32.mxu0 0.0
      %325 = vmatmul.mubr.f32.gmra.mxu0 %v209
      %v326 = vpop.f32.mrf.mxu0
      %v327 = vadd.f32 %v199, %v326
      %v328 = vpop.f32.mrf.mxu0
      %329 = vmatprep.mubr.f32.mxu0 0.0
      %330 = vmatmul.mubr.f32.gmra.mxu0 %v212
      %v331 = vpop.f32.mrf.mxu0
      %v332 = vadd.f32 %v199, %v331
      %v333 = vpop.f32.mrf.mxu0
      %334 = vmatprep.mubr.f32.mxu0 0.0
      %335 = vmatmul.mubr.f32.gmra.mxu0 %v215
      %v336 = vpop.f32.mrf.mxu0
      %v337 = vadd.f32 %v199, %v336
      %v338 = vpop.f32.mrf.mxu0
      %339 = vmatprep.mubr.f32.mxu0 0.0
      %340 = vmatmul.mubr.f32.gmra.mxu0 %v218
      %v341 = vpop.f32.mrf.mxu0
      %v342 = vadd.f32 %v199, %v341
      %v343 = vpop.f32.mrf.mxu0
      %344 = vmatprep.mubr.f32.mxu0 0.0
      %345 = vmatmul.mubr.f32.gmra.mxu0 %v221
      %v346 = vpop.f32.mrf.mxu0
      %v347 = vadd.f32 %v199, %v346
      %v348 = vpop.f32.mrf.mxu0
      %349 = vmatprep.mubr.f32.mxu0 0.0
      %350 = vmatmul.mubr.f32.gmra.mxu0 %v224
      %v351 = vpop.f32.mrf.mxu0
      %v352 = vadd.f32 %v199, %v351
      %v353 = vpop.f32.mrf.mxu0
      %354 = vmatprep.mubr.f32.mxu0 0.0
      %355 = vmatmul.mubr.f32.gmra.mxu0 %v227
      %v356 = vpop.f32.mrf.mxu0
      %v357 = vadd.f32 %v199, %v356
      %v358 = vpop.f32.mrf.mxu0
      %359 = vmatprep.mubr.f32.mxu0 0.0
      %360 = vmatmul.mubr.f32.gmra.mxu0 %v230
      %v361 = vpop.f32.mrf.mxu0
      %v362 = vadd.f32 %v199, %v361
      %v363 = vpop.f32.mrf.mxu0
      %364 = vmatprep.mubr.f32.mxu0 0.0
      %365 = vmatmul.mubr.f32.gmra.mxu0 %v233
      %v366 = vpop.f32.mrf.mxu0
      %v367 = vadd.f32 %v199, %v366
      %v368 = vpop.f32.mrf.mxu0
      %369 = vmatprep.mubr.f32.mxu0 0.0
      %370 = vmatmul.mubr.f32.gmra.mxu0 %v236
      %v371 = vpop.f32.mrf.mxu0
      %v372 = vadd.f32 %v199, %v371
      %v373 = vpop.f32.mrf.mxu0
      %374 = vmatprep.mubr.f32.mxu0 0.0
      %375 = vmatmul.mubr.f32.gmra.mxu0 %v239
      %v376 = vpop.f32.mrf.mxu0
      %v377 = vadd.f32 %v199, %v376
      %v378 = vpop.f32.mrf.mxu0
      %379 = vmatprep.mubr.f32.mxu0 0.0
      %380 = vmatmul.mubr.f32.gmra.mxu0 %v242
      %v381 = vpop.f32.mrf.mxu0
      %v382 = vadd.f32 %v199, %v381
      %v383 = vpop.f32.mrf.mxu0
      %384 = vmatprep.mubr.f32.mxu0 0.0
      %385 = vmatmul.mubr.f32.gmra.mxu0 %v245
      %v386 = vpop.f32.mrf.mxu0
      %v387 = vadd.f32 %v199, %v386
      %v388 = vpop.f32.mrf.mxu0
      %389 = vmatprep.mubr.f32.mxu0 0.0
      %390 = vmatmul.mubr.f32.gmra.mxu0 %v248
      %v391 = vpop.f32.mrf.mxu0
      %v392 = vadd.f32 %v199, %v391
      %v393 = vpop.f32.mrf.mxu0
      %394 = vdwg.mxu0
      %395 = vst [vmem:[%s172] sm:$0xff] %v317
      %396 = vst [vmem:[%s172 + $0x8] sm:$0xff] %v322
      %397 = vst [vmem:[%s172 + $0x10] sm:$0xff] %v327
      %398 = vst [vmem:[%s172 + $0x18] sm:$0xff] %v332
      %399 = vst [vmem:[%s172 + $0x20] sm:$0xff] %v337
      %400 = vst [vmem:[%s172 + $0x28] sm:$0xff] %v342
      %401 = vst [vmem:[%s172 + $0x30] sm:$0xff] %v347
      %402 = vst [vmem:[%s172 + $0x38] sm:$0xff] %v352
      %403 = vst [vmem:[%s172 + $0x40] sm:$0xff] %v357
      %404 = vst [vmem:[%s172 + $0x48] sm:$0xff] %v362
      %405 = vst [vmem:[%s172 + $0x50] sm:$0xff] %v367
      %406 = vst [vmem:[%s172 + $0x58] sm:$0xff] %v372
      %407 = vst [vmem:[%s172 + $0x60] sm:$0xff] %v377
      %408 = vst [vmem:[%s172 + $0x68] sm:$0xff] %v382
      %409 = vst [vmem:[%s172 + $0x70] sm:$0xff] %v387
      %410 = vst [vmem:[%s172 + $0x78] sm:$0xff] %v392
      %s411 = smul.u32 16, %s14
      %p412 = scmp.lt.s32.totalorder %s411, 31
      %s413 = scalar_select %p412, %s411, 31
      %s414 = smul.addr %s413, 8
      %s415 = scalar_lea.vmem %s3, %s414
      // Predicated region
      $region33: #{dense_graph_conv.2} parent=31 // pred_check
        %p416 = pneg %p100
      $region34: #{dense_graph_conv.2} parent=31 // pred_check_branch
        %418 = sbr.rel (%p416) target = $region36
      $region35: #{dense_graph_conv.2} parent=31 // pred_region
        %s419 = smul.u32 16, %s14
      $region36: #{dense_graph_conv.2} parent=31 // pred_fallthru
        _
    $region32: #{dense_graph_conv.2} parent=5 // pred_fallthru
      _
    %p420 = scmp.le.s32.totalorder 2, %s9
    // Predicated region
    $region37: #{dense_graph_conv.2} parent=5 // pred_check
      %p421 = pneg %p420
    $region38: #{dense_graph_conv.2} parent=5 // pred_check_branch
      %423 = sbr.rel (%p421) target = $region40
    $region39: #{dense_graph_conv.2} parent=5 // pred_region
      %s424 = ssub.s32 %s9, 2
      // Predicated region
      $region41: #{dense_graph_conv.2} parent=39 // pred_check
        %p425 = pneg %p106
      $region42: #{dense_graph_conv.2} parent=39 // pred_check_branch
        %427 = sbr.rel (%p425) target = $region44
      $region43: #{dense_graph_conv.2} parent=39 // pred_region
        %s428 = smul.u32 16, %s15
        %p429 = scmp.lt.s32.totalorder %s428, 31
        %s430 = scalar_select %p429, %s428, 31
        %s431 = smul.addr %s430, 8
        %s432 = scalar_lea.vmem %s3, %s431
      $region44: #{dense_graph_conv.2} parent=39 // pred_fallthru
        _
    $region40: #{dense_graph_conv.2} parent=5 // pred_fallthru
      _
  $region6: #{dense_graph_conv.2} parent=0 // loop_footer
    %s13 = sadd.s32 1, %s9
  $region7: #{dense_graph_conv.2} parent=0 // loop_footer_branch
    %8 = sbr.rel target = $region3
  $region8: #{dense_graph_conv.2} parent=0 // loop_exit
    _

// kernel: dense_graph_conv.3
$region0: #{dense_graph_conv.3}
  #allocation0 [shape = 'u32[]', space=smem, size = 0x4, offset = 0x4, fixed_abs, tag = 'smem constant byte address 0x4 - core index']
  #allocation1 [shape = 'u32[144,128]{1,0:T(1,128)}', space=vmem, size = 0x12000, scoped, tag = 'internal scratch']
  #allocation2 [shape = 'f32[128,128]{1,0:T(8,128)}', space=vmem, size = 0x10000, scoped, tag = 'scratch operand']
  %s0 = inlined_call_operand.vmem [shape: f32[2,128,128], index: 0, kind: input, shape index: {}]
  %s1 = inlined_call_operand.vmem [shape: f32[2,128,128], index: 1, kind: input, shape index: {}]
  %s2 = inlined_call_operand.vmem [shape: f32[1,128], index: 2, kind: input, shape index: {}]
  %s3 = inlined_call_operand.vmem [shape: f32[2,128,128], index: 3, kind: output, shape index: {}]
  %s4 = sld [smem:[#allocation0]]
  $region53: #{dense_graph_conv.3} parent=0
    _
  %s6 = ssub.s32 1, %s4
  %s7 = scalar_select 0, %s6, %s4
  loop: start=0, step=1, limit=4
  $region2: #{dense_graph_conv.3} parent=0 // loop_pre_header
    _
  $region3: #{dense_graph_conv.3} parent=0 // loop_header
    %s9 = sphi 0, %s13
    %p10 = scmp.ge.s32.totalorder %s9, 4
    %s16 = sphi 0, %s35
    %s17 = sphi 0, %s31
    %s18 = sphi 0, %s27
    %s19 = sphi 0, %s16
    %s20 = sphi 0, %s17
    %s21 = sphi 0, %s18
    %s22 = sphi 0, %s19
    %s23 = sphi 0, %s20
    %s24 = sphi 0, %s21
    %s42 = sphi 0, %s44
    %s45 = sphi 0, %s42
    %s46 = sphi 0, %s45
    %s62 = sphi 0, %s46
    %s68 = sphi 0, %s70
    %s71 = sphi 0, %s68
    %s72 = sphi 0, %s71
    %s88 = sphi 0, %s72
    %s92 = sphi 0, %s92
    %s94 = sphi 0, %s92
    %s95 = sphi 0, %s94
    %s109 = sphi 0, %s95
    %s117 = sphi 0, %s119
    %s120 = sphi 0, %s117
    %s121 = sphi 0, %s120
    %s137 = sphi 0, %s121
  $region4: #{dense_graph_conv.3} parent=0 // loop_header_branch
    %12 = sbr.rel (%p10) target = $region8
  $region5: #{dense_graph_conv.3} parent=0 // loop_body
    %s14 = ssub.s32 %s9, 1
    %s15 = ssub.s32 %s9, 2
    %s25 = sadd.s32 1, %s18
    %p26 = scmp.ge.s32.totalorder %s25, 1
    %s27 = scalar_select %p26, 0, %s25
    %s28 = sadd.s32 1, %s17
    %s29 = scalar_select %p26, %s28, %s17
    %p30 = scmp.ge.s32.totalorder %s29, 1
    %s31 = scalar_select %p30, 0, %s29
    %s32 = sadd.s32 1, %s16
    %s33 = scalar_select %p30, %s32, %s16
    %p34 = scmp.ge.s32.totalorder %s33, 2
    %s35 = scalar_select %p34, 0, %s33
    %s36 = ssub.s32 %s16, %s35
    %s37 = ssub.s32 %s17, %s31
    %s38 = sor.u32 %s36, %s37
    %s39 = ssub.s32 %s18, %s27
    %s40 = sor.u32 %s38, %s39
    %p41 = scmp.eq.s32.totalorder %s40, 0
    %s43 = sadd.s32 %s42, 1
    %s44 = scalar_select %p41, %s42, %s43
    %p47 = pneg %p41
    %p48 = scmp.eq.s32.totalorder %s9, 1
    %p49 = por %p47, %p48
    %p50 = scmp.ne.s32.totalorder %s42, %s45
    %p51 = scmp.eq.s32.totalorder %s9, 0
    %p52 = por %p50, %p51
    %p53 = scmp.ne.s32.totalorder %s42, %s45
    %p54 = scmp.eq.s32.totalorder %s14, 1
    %p55 = por %p53, %p54
    %p56 = scmp.ne.s32.totalorder %s45, %s46
    %p57 = scmp.eq.s32.totalorder %s14, 0
    %p58 = por %p56, %p57
    %p59 = scmp.ne.s32.totalorder %s45, %s46
    %p60 = scmp.eq.s32.totalorder %s15, 1
    %p61 = por %p59, %p60
    %p63 = scmp.ne.s32.totalorder %s46, %s62
    %p64 = scmp.eq.s32.totalorder %s15, 0
    %p65 = por %p63, %p64
    %s66 = ssub.s32 %s16, %s35
    %p67 = scmp.eq.s32.totalorder %s66, 0
    %s69 = sadd.s32 %s68, 1
    %s70 = scalar_select %p67, %s68, %s69
    %p73 = pneg %p67
    %p74 = scmp.eq.s32.totalorder %s9, 1
    %p75 = por %p73, %p74
    %p76 = scmp.ne.s32.totalorder %s68, %s71
    %p77 = scmp.eq.s32.totalorder %s9, 0
    %p78 = por %p76, %p77
    %p79 = scmp.ne.s32.totalorder %s68, %s71
    %p80 = scmp.eq.s32.totalorder %s14, 1
    %p81 = por %p79, %p80
    %p82 = scmp.ne.s32.totalorder %s71, %s72
    %p83 = scmp.eq.s32.totalorder %s14, 0
    %p84 = por %p82, %p83
    %p85 = scmp.ne.s32.totalorder %s71, %s72
    %p86 = scmp.eq.s32.totalorder %s15, 1
    %p87 = por %p85, %p86
    %p89 = scmp.ne.s32.totalorder %s72, %s88
    %p90 = scmp.eq.s32.totalorder %s15, 0
    %p91 = por %p89, %p90
    %s93 = sadd.s32 %s92, 1
    %p96 = scmp.eq.s32.totalorder %s9, 1
    %p97 = scmp.ne.s32.totalorder %s92, %s94
    %p98 = scmp.eq.s32.totalorder %s9, 0
    %p99 = por %p97, %p98
    %p100 = scmp.ne.s32.totalorder %s92, %s94
    %p101 = scmp.eq.s32.totalorder %s14, 1
    %p102 = por %p100, %p101
    %p103 = scmp.ne.s32.totalorder %s94, %s95
    %p104 = scmp.eq.s32.totalorder %s14, 0
    %p105 = por %p103, %p104
    %p106 = scmp.ne.s32.totalorder %s94, %s95
    %p107 = scmp.eq.s32.totalorder %s15, 1
    %p108 = por %p106, %p107
    %p110 = scmp.ne.s32.totalorder %s95, %s109
    %p111 = scmp.eq.s32.totalorder %s15, 0
    %p112 = por %p110, %p111
    %s113 = ssub.s32 %s16, %s35
    %s114 = ssub.s32 %s17, %s31
    %s115 = sor.u32 %s113, %s114
    %p116 = scmp.eq.s32.totalorder %s115, 0
    %s118 = sadd.s32 %s117, 1
    %s119 = scalar_select %p116, %s117, %s118
    %p122 = pneg %p116
    %p123 = scmp.eq.s32.totalorder %s9, 1
    %p124 = por %p122, %p123
    %p125 = scmp.ne.s32.totalorder %s117, %s120
    %p126 = scmp.eq.s32.totalorder %s9, 0
    %p127 = por %p125, %p126
    %p128 = scmp.ne.s32.totalorder %s117, %s120
    %p129 = scmp.eq.s32.totalorder %s14, 1
    %p130 = por %p128, %p129
    %p131 = scmp.ne.s32.totalorder %s120, %s121
    %p132 = scmp.eq.s32.totalorder %s14, 0
    %p133 = por %p131, %p132
    %p134 = scmp.ne.s32.totalorder %s120, %s121
    %p135 = scmp.eq.s32.totalorder %s15, 1
    %p136 = por %p134, %p135
    %p138 = scmp.ne.s32.totalorder %s121, %s137
    %p139 = scmp.eq.s32.totalorder %s15, 0
    %p140 = por %p138, %p139
    %p141 = scmp.le.s32.totalorder 1, %s9
    %p142 = scmp.lt.s32.totalorder %s9, 3
    %p143 = pnand %p141, %p142
    %p144 = pneg %p143
    // Predicated region
    $region9: #{dense_graph_conv.3} parent=5 // pred_check
      _
    $region10: #{dense_graph_conv.3} parent=5 // pred_check_branch
      %146 = sbr.rel (%p143) target = $region12
    $region11: #{dense_graph_conv.3} parent=5 // pred_region
      %s147 = ssub.s32 %s9, 1
      // Predicated region
      $region13: #{dense_graph_conv.3} parent=11 // pred_check
        %p148 = pneg %p105
      $region14: #{dense_graph_conv.3} parent=11 // pred_check_branch
        %150 = sbr.rel (%p148) target = $region16
      $region15: #{dense_graph_conv.3} parent=11 // pred_region
        _
      $region16: #{dense_graph_conv.3} parent=11 // pred_fallthru
        _
    $region12: #{dense_graph_conv.3} parent=5 // pred_fallthru
      _
    %p151 = scmp.lt.s32.totalorder %s9, 2
    // Predicated region
    $region17: #{dense_graph_conv.3} parent=5 // pred_check
      %p152 = pneg %p151
    $region18: #{dense_graph_conv.3} parent=5 // pred_check_branch
      %154 = sbr.rel (%p152) target = $region20
    $region19: #{dense_graph_conv.3} parent=5 // pred_region
      // Predicated region
      $region21: #{dense_graph_conv.3} parent=19 // pred_check
        %p155 = pneg %p52
      $region22: #{dense_graph_conv.3} parent=19 // pred_check_branch
        %157 = sbr.rel (%p155) target = $region24
      $region23: #{dense_graph_conv.3} parent=19 // pred_region
        %s158 = smul.u32 16, %s17
        %p159 = scmp.lt.s32.totalorder %s16, 1
        %s160 = scalar_select %p159, %s16, 1
        %p161 = scmp.lt.s32.totalorder %s158, 15
        %s162 = scalar_select %p161, %s158, 15
        %p163 = scmp.lt.s32.totalorder %s18, 0
        %s164 = scalar_select %p163, %s18, 0
        %s165 = sadd.s32 %s164, %s162
        %s166 = smul.addr %s160, 16
        %s167 = sadd.s32 %s165, %s166
        %s168 = smul.addr %s167, 8
        %s169 = scalar_lea.vmem %s0, %s168
        %s170 = smul.u32 16, %s17
      $region24: #{dense_graph_conv.3} parent=19 // pred_fallthru
        _
      // Predicated region
      $region25: #{dense_graph_conv.3} parent=19 // pred_check
        %p171 = pneg %p78
      $region26: #{dense_graph_conv.3} parent=19 // pred_check_branch
        %173 = sbr.rel (%p171) target = $region28
      $region27: #{dense_graph_conv.3} parent=19 // pred_region
        %p174 = scmp.lt.s32.totalorder %s16, 1
        %s175 = scalar_select %p174, %s16, 1
        %s176 = smul.addr %s175, 16
        %s177 = smul.addr %s176, 8
        %s178 = scalar_lea.vmem %s1, %s177
      $region28: #{dense_graph_conv.3} parent=19 // pred_fallthru
        _
    $region20: #{dense_graph_conv.3} parent=5 // pred_fallthru
      _
    %p179 = scmp.le.s32.totalorder 1, %s9
    %p180 = scmp.lt.s32.totalorder %s9, 3
    %p181 = pnand %p179, %p180
    %p182 = pneg %p181
    // Predicated region
    $region29: #{dense_graph_conv.3} parent=5 // pred_check
      _
    $region30: #{dense_graph_conv.3} parent=5 // pred_check_branch
      %184 = sbr.rel (%p181) target = $region32
    $region31: #{dense_graph_conv.3} parent=5 // pred_region
      %s185 = ssub.s32 %s9, 1
      %s186 = smul.u32 16, %s20
      %p187 = scmp.lt.s32.totalorder %s19, 1
      %s188 = scalar_select %p187, %s19, 1
      %p189 = scmp.lt.s32.totalorder %s186, 15
      %s190 = scalar_select %p189, %s186, 15
      %p191 = scmp.lt.s32.totalorder %s21, 0
      %s192 = scalar_select %p191, %s21, 0
      %s193 = sadd.s32 %s192, %s190
      %s194 = smul.addr %s188, 16
      %s195 = sadd.s32 %s193, %s194
      %s196 = smul.addr %s195, 8
      %s197 = scalar_lea.vmem %s0, %s196
      %p198 = pneg %p58
      %p199 = pneg %p55
      %p200 = scmp.lt.s32.totalorder %s19, 1
      %s201 = scalar_select %p200, %s19, 1
      %s202 = smul.addr %s201, 16
      %s203 = smul.addr %s202, 8
      %s204 = scalar_lea.vmem %s1, %s203
      %p205 = pneg %p84
      %p206 = pneg %p81
      %p207 = pneg %p105
      %p208 = pneg %p102
      %p209 = pneg %p133
      %p210 = pneg %p130
      %s211 = smul.u32 16, %s20
      %p212 = scmp.lt.s32.totalorder %s19, 1
      %s213 = scalar_select %p212, %s19, 1
      %p214 = scmp.lt.s32.totalorder %s211, 15
      %s215 = scalar_select %p214, %s211, 15
      %s216 = smul.addr %s213, 16
      %s217 = sadd.s32 %s215, %s216
      %s218 = smul.addr %s217, 8
      %s219 = scalar_lea.vmem %s3, %s218
      %s220 = smul.u32 16, %s20
      %p221 = scmp.lt.s32.totalorder %s19, 1
      %s222 = scalar_select %p221, %s19, 1
      %p223 = scmp.lt.s32.totalorder %s220, 15
      %s224 = scalar_select %p223, %s220, 15
      %p225 = scmp.lt.s32.totalorder %s21, 0
      %s226 = scalar_select %p225, %s21, 0
      %s227 = sadd.s32 %s226, %s224
      %s228 = smul.addr %s222, 16
      %s229 = sadd.s32 %s227, %s228
      %s230 = smul.addr %s229, 8
      %s231 = scalar_lea.vmem %s0, %s230
      %s232 = smul.u32 16, %s20
      %p233 = scmp.lt.s32.totalorder %s19, 1
      %s234 = scalar_select %p233, %s19, 1
      %s235 = smul.addr %s234, 16
      %s236 = smul.addr %s235, 8
      %s237 = scalar_lea.vmem %s1, %s236
      %s238 = smul.u32 16, %s20
      %p239 = scmp.lt.s32.totalorder %s19, 1
      %s240 = scalar_select %p239, %s19, 1
      %p241 = scmp.lt.s32.totalorder %s238, 15
      %s242 = scalar_select %p241, %s238, 15
      %s243 = smul.addr %s240, 16
      %s244 = sadd.s32 %s242, %s243
      %s245 = smul.addr %s244, 8
      %s246 = scalar_lea.vmem %s3, %s245
      %s247 = smul.u32 16, %s20
      %p248 = scmp.eq.s32.totalorder %s21, 0
      // Predicated region
      $region33: #{dense_graph_conv.3} parent=31 // pred_check
        %p249 = pneg %p248
      $region34: #{dense_graph_conv.3} parent=31 // pred_check_branch
        %251 = sbr.rel (%p249) target = $region36
      $region35: #{dense_graph_conv.3} parent=31 // pred_region
        %252 = vst [vmem:[#allocation2] sm:$0xff] 0.0
        %253 = vst [vmem:[#allocation2 + $0x8] sm:$0xff] 0.0
        %254 = vst [vmem:[#allocation2 + $0x10] sm:$0xff] 0.0
        %255 = vst [vmem:[#allocation2 + $0x18] sm:$0xff] 0.0
        %256 = vst [vmem:[#allocation2 + $0x20] sm:$0xff] 0.0
        %257 = vst [vmem:[#allocation2 + $0x28] sm:$0xff] 0.0
        %258 = vst [vmem:[#allocation2 + $0x30] sm:$0xff] 0.0
        %259 = vst [vmem:[#allocation2 + $0x38] sm:$0xff] 0.0
        %260 = vst [vmem:[#allocation2 + $0x40] sm:$0xff] 0.0
        %261 = vst [vmem:[#allocation2 + $0x48] sm:$0xff] 0.0
        %262 = vst [vmem:[#allocation2 + $0x50] sm:$0xff] 0.0
        %263 = vst [vmem:[#allocation2 + $0x58] sm:$0xff] 0.0
        %264 = vst [vmem:[#allocation2 + $0x60] sm:$0xff] 0.0
        %265 = vst [vmem:[#allocation2 + $0x68] sm:$0xff] 0.0
        %266 = vst [vmem:[#allocation2 + $0x70] sm:$0xff] 0.0
        %267 = vst [vmem:[#allocation2 + $0x78] sm:$0xff] 0.0
      $region36: #{dense_graph_conv.3} parent=31 // pred_fallthru
        _
      %s268 = smul.u32 %s21, 128
      %s269 = scalar_lea.vmem %s237, %s268
      %v270 = vld [vmem:[%s269] sm:$0xff]
      %v271 = vld [vmem:[%s269 + $0x8] sm:$0xff]
      %v272 = vld [vmem:[%s269 + $0x10] sm:$0xff]
      %v273 = vld [vmem:[%s269 + $0x18] sm:$0xff]
      %v274 = vld [vmem:[%s269 + $0x20] sm:$0xff]
      %v275 = vld [vmem:[%s269 + $0x28] sm:$0xff]
      %v276 = vld [vmem:[%s269 + $0x30] sm:$0xff]
      %v277 = vld [vmem:[%s269 + $0x38] sm:$0xff]
      %v278 = vld [vmem:[%s269 + $0x40] sm:$0xff]
      %v279 = vld [vmem:[%s269 + $0x48] sm:$0xff]
      %v280 = vld [vmem:[%s269 + $0x50] sm:$0xff]
      %v281 = vld [vmem:[%s269 + $0x58] sm:$0xff]
      %v282 = vld [vmem:[%s269 + $0x60] sm:$0xff]
      %v283 = vld [vmem:[%s269 + $0x68] sm:$0xff]
      %v284 = vld [vmem:[%s269 + $0x70] sm:$0xff]
      %v285 = vld [vmem:[%s269 + $0x78] sm:$0xff]
      %v286 = vld [vmem:[#allocation2] sm:$0xff]
      %v287 = vld [vmem:[#allocation2 + $0x8] sm:$0xff]
      %v288 = vld [vmem:[#allocation2 + $0x10] sm:$0xff]
      %v289 = vld [vmem:[#allocation2 + $0x18] sm:$0xff]
      %v290 = vld [vmem:[#allocation2 + $0x20] sm:$0xff]
      %v291 = vld [vmem:[#allocation2 + $0x28] sm:$0xff]
      %v292 = vld [vmem:[#allocation2 + $0x30] sm:$0xff]
      %v293 = vld [vmem:[#allocation2 + $0x38] sm:$0xff]
      %v294 = vld [vmem:[#allocation2 + $0x40] sm:$0xff]
      %v295 = vld [vmem:[#allocation2 + $0x48] sm:$0xff]
      %v296 = vld [vmem:[#allocation2 + $0x50] sm:$0xff]
      %v297 = vld [vmem:[#allocation2 + $0x58] sm:$0xff]
      %v298 = vld [vmem:[#allocation2 + $0x60] sm:$0xff]
      %v299 = vld [vmem:[#allocation2 + $0x68] sm:$0xff]
      %v300 = vld [vmem:[#allocation2 + $0x70] sm:$0xff]
      %v301 = vld [vmem:[#allocation2 + $0x78] sm:$0xff]
      %v302 = vld [vmem:[%s231] sm:$0xff]
      %v303 = vld [vmem:[%s231 + $0x8] sm:$0xff]
      %v304 = vld [vmem:[%s231 + $0x10] sm:$0xff]
      %v305 = vld [vmem:[%s231 + $0x18] sm:$0xff]
      %v306 = vld [vmem:[%s231 + $0x20] sm:$0xff]
      %v307 = vld [vmem:[%s231 + $0x28] sm:$0xff]
      %v308 = vld [vmem:[%s231 + $0x30] sm:$0xff]
      %v309 = vld [vmem:[%s231 + $0x38] sm:$0xff]
      %v310 = vld [vmem:[%s231 + $0x40] sm:$0xff]
      %v311 = vld [vmem:[%s231 + $0x48] sm:$0xff]
      %v312 = vld [vmem:[%s231 + $0x50] sm:$0xff]
      %v313 = vld [vmem:[%s231 + $0x58] sm:$0xff]
      %v314 = vld [vmem:[%s231 + $0x60] sm:$0xff]
      %v315 = vld [vmem:[%s231 + $0x68] sm:$0xff]
      %v316 = vld [vmem:[%s231 + $0x70] sm:$0xff]
      %v317 = vld [vmem:[%s231 + $0x78] sm:$0xff]
      %318 = vmatprep.subr.mxu0 0.0
      %319 = vmatpush1.msra.mxu0 %v285
      %320 = vmatprep.subr.mxu0 0.0
      %321 = vmatpush1.msra.mxu0 %v284
      %322 = vmatprep.subr.mxu0 0.0
      %323 = vmatpush1.msra.mxu0 %v283
      %324 = vmatprep.subr.mxu0 0.0
      %325 = vmatpush1.msra.mxu0 %v282
      %326 = vmatprep.subr.mxu0 0.0
      %327 = vmatpush1.msra.mxu0 %v281
      %328 = vmatprep.subr.mxu0 0.0
      %329 = vmatpush1.msra.mxu0 %v280
      %330 = vmatprep.subr.mxu0 0.0
      %331 = vmatpush1.msra.mxu0 %v279
      %332 = vmatprep.subr.mxu0 0.0
      %333 = vmatpush1.msra.mxu0 %v278
      %334 = vmatprep.subr.mxu0 0.0
      %335 = vmatpush1.msra.mxu0 %v277
      %336 = vmatprep.subr.mxu0 0.0
      %337 = vmatpush1.msra.mxu0 %v276
      %338 = vmatprep.subr.mxu0 0.0
      %339 = vmatpush1.msra.mxu0 %v275
      %340 = vmatprep.subr.mxu0 0.0
      %341 = vmatpush1.msra.mxu0 %v274
      %342 = vmatprep.subr.mxu0 0.0
      %343 = vmatpush1.msra.mxu0 %v273
      %344 = vmatprep.subr.mxu0 0.0
      %345 = vmatpush1.msra.mxu0 %v272
      %346 = vmatprep.subr.mxu0 0.0
      %347 = vmatpush1.msra.mxu0 %v271
      %348 = vmatprep.subr.mxu0 0.0
      %349 = vmatpush1.msra.mxu0 %v270
      %350 = vmatprep.subr.mxu0 0.0
      %351 = vmatpush2.msra.mxu0 0.0
      %352 = vmatprep.subr.mxu0 0.0
      %353 = vmatpush2.msra.mxu0 0.0
      %354 = vmatprep.subr.mxu0 0.0
      %355 = vmatpush2.msra.mxu0 0.0
      %356 = vmatprep.subr.mxu0 0.0
      %357 = vmatpush2.msra.mxu0 0.0
      %358 = vmatprep.subr.mxu0 0.0
      %359 = vmatpush2.msra.mxu0 0.0
      %360 = vmatprep.subr.mxu0 0.0
      %361 = vmatpush2.msra.mxu0 0.0
      %362 = vmatprep.subr.mxu0 0.0
      %363 = vmatpush2.msra.mxu0 0.0
      %364 = vmatprep.subr.mxu0 0.0
      %365 = vmatpush2.msra.mxu0 0.0
      %366 = vmatprep.subr.mxu0 0.0
      %367 = vmatpush2.msra.mxu0 0.0
      %368 = vmatprep.subr.mxu0 0.0
      %369 = vmatpush2.msra.mxu0 0.0
      %370 = vmatprep.subr.mxu0 0.0
      %371 = vmatpush2.msra.mxu0 0.0
      %372 = vmatprep.subr.mxu0 0.0
      %373 = vmatpush2.msra.mxu0 0.0
      %374 = vmatprep.subr.mxu0 0.0
      %375 = vmatpush2.msra.mxu0 0.0
      %376 = vmatprep.subr.mxu0 0.0
      %377 = vmatpush2.msra.mxu0 0.0
      %378 = vmatprep.subr.mxu0 0.0
      %379 = vmatpush2.msra.mxu0 0.0
      %380 = vmatprep.subr.mxu0 0.0
      %381 = vmatpush2.msra.mxu0 0.0
      %382 = vmatprep.mubr.f32.mxu0 0.0
      %383 = vmatmul.mubr.f32.gmra.mxu0 %v302
      %v384 = vpop.f32.mrf.mxu0
      %v385 = vadd.f32 0.0, %v384
      %v386 = vpop.f32.mrf.mxu0
      %387 = vmatprep.mubr.f32.mxu0 0.0
      %388 = vmatmul.mubr.f32.gmra.mxu0 %v303
      %v389 = vpop.f32.mrf.mxu0
      %v390 = vadd.f32 0.0, %v389
      %v391 = vpop.f32.mrf.mxu0
      %392 = vmatprep.mubr.f32.mxu0 0.0
      %393 = vmatmul.mubr.f32.gmra.mxu0 %v304
      %v394 = vpop.f32.mrf.mxu0
      %v395 = vadd.f32 0.0, %v394
      %v396 = vpop.f32.mrf.mxu0
      %397 = vmatprep.mubr.f32.mxu0 0.0
      %398 = vmatmul.mubr.f32.gmra.mxu0 %v305
      %v399 = vpop.f32.mrf.mxu0
      %v400 = vadd.f32 0.0, %v399
      %v401 = vpop.f32.mrf.mxu0
      %402 = vmatprep.mubr.f32.mxu0 0.0
      %403 = vmatmul.mubr.f32.gmra.mxu0 %v306
      %v404 = vpop.f32.mrf.mxu0
      %v405 = vadd.f32 0.0, %v404
      %v406 = vpop.f32.mrf.mxu0
      %407 = vmatprep.mubr.f32.mxu0 0.0
      %408 = vmatmul.mubr.f32.gmra.mxu0 %v307
      %v409 = vpop.f32.mrf.mxu0
      %v410 = vadd.f32 0.0, %v409
      %v411 = vpop.f32.mrf.mxu0
      %412 = vmatprep.mubr.f32.mxu0 0.0
      %413 = vmatmul.mubr.f32.gmra.mxu0 %v308
      %v414 = vpop.f32.mrf.mxu0
      %v415 = vadd.f32 0.0, %v414
      %v416 = vpop.f32.mrf.mxu0
      %417 = vmatprep.mubr.f32.mxu0 0.0
      %418 = vmatmul.mubr.f32.gmra.mxu0 %v309
      %v419 = vpop.f32.mrf.mxu0
      %v420 = vadd.f32 0.0, %v419
      %v421 = vpop.f32.mrf.mxu0
      %422 = vmatprep.mubr.f32.mxu0 0.0
      %423 = vmatmul.mubr.f32.gmra.mxu0 %v310
      %v424 = vpop.f32.mrf.mxu0
      %v425 = vadd.f32 0.0, %v424
      %v426 = vpop.f32.mrf.mxu0
      %427 = vmatprep.mubr.f32.mxu0 0.0
      %428 = vmatmul.mubr.f32.gmra.mxu0 %v311
      %v429 = vpop.f32.mrf.mxu0
      %v430 = vadd.f32 0.0, %v429
      %v431 = vpop.f32.mrf.mxu0
      %432 = vmatprep.mubr.f32.mxu0 0.0
      %433 = vmatmul.mubr.f32.gmra.mxu0 %v312
      %v434 = vpop.f32.mrf.mxu0
      %v435 = vadd.f32 0.0, %v434
      %v436 = vpop.f32.mrf.mxu0
      %437 = vmatprep.mubr.f32.mxu0 0.0
      %438 = vmatmul.mubr.f32.gmra.mxu0 %v313
      %v439 = vpop.f32.mrf.mxu0
      %v440 = vadd.f32 0.0, %v439
      %v441 = vpop.f32.mrf.mxu0
      %442 = vmatprep.mubr.f32.mxu0 0.0
      %443 = vmatmul.mubr.f32.gmra.mxu0 %v314
      %v444 = vpop.f32.mrf.mxu0
      %v445 = vadd.f32 0.0, %v444
      %v446 = vpop.f32.mrf.mxu0
      %447 = vmatprep.mubr.f32.mxu0 0.0
      %448 = vmatmul.mubr.f32.gmra.mxu0 %v315
      %v449 = vpop.f32.mrf.mxu0
      %v450 = vadd.f32 0.0, %v449
      %v451 = vpop.f32.mrf.mxu0
      %452 = vmatprep.mubr.f32.mxu0 0.0
      %453 = vmatmul.mubr.f32.gmra.mxu0 %v316
      %v454 = vpop.f32.mrf.mxu0
      %v455 = vadd.f32 0.0, %v454
      %v456 = vpop.f32.mrf.mxu0
      %457 = vmatprep.mubr.f32.mxu0 0.0
      %458 = vmatmul.mubr.f32.gmra.mxu0 %v317
      %v459 = vpop.f32.mrf.mxu0
      %v460 = vadd.f32 0.0, %v459
      %v461 = vpop.f32.mrf.mxu0
      %462 = vdwg.mxu0
      %v463 = vadd.f32 %v286, %v385
      %v464 = vadd.f32 %v287, %v390
      %v465 = vadd.f32 %v288, %v395
      %v466 = vadd.f32 %v289, %v400
      %v467 = vadd.f32 %v290, %v405
      %v468 = vadd.f32 %v291, %v410
      %v469 = vadd.f32 %v292, %v415
      %v470 = vadd.f32 %v293, %v420
      %v471 = vadd.f32 %v294, %v425
      %v472 = vadd.f32 %v295, %v430
      %v473 = vadd.f32 %v296, %v435
      %v474 = vadd.f32 %v297, %v440
      %v475 = vadd.f32 %v298, %v445
      %v476 = vadd.f32 %v299, %v450
      %v477 = vadd.f32 %v300, %v455
      %v478 = vadd.f32 %v301, %v460
      %479 = vst [vmem:[#allocation2] sm:$0xff] %v463
      %480 = vst [vmem:[#allocation2 + $0x8] sm:$0xff] %v464
      %481 = vst [vmem:[#allocation2 + $0x10] sm:$0xff] %v465
      %482 = vst [vmem:[#allocation2 + $0x18] sm:$0xff] %v466
      %483 = vst [vmem:[#allocation2 + $0x20] sm:$0xff] %v467
      %484 = vst [vmem:[#allocation2 + $0x28] sm:$0xff] %v468
      %485 = vst [vmem:[#allocation2 + $0x30] sm:$0xff] %v469
      %486 = vst [vmem:[#allocation2 + $0x38] sm:$0xff] %v470
      %487 = vst [vmem:[#allocation2 + $0x40] sm:$0xff] %v471
      %488 = vst [vmem:[#allocation2 + $0x48] sm:$0xff] %v472
      %489 = vst [vmem:[#allocation2 + $0x50] sm:$0xff] %v473
      %490 = vst [vmem:[#allocation2 + $0x58] sm:$0xff] %v474
      %491 = vst [vmem:[#allocation2 + $0x60] sm:$0xff] %v475
      %492 = vst [vmem:[#allocation2 + $0x68] sm:$0xff] %v476
      %493 = vst [vmem:[#allocation2 + $0x70] sm:$0xff] %v477
      %494 = vst [vmem:[#allocation2 + $0x78] sm:$0xff] %v478
      // Predicated region
      $region37: #{dense_graph_conv.3} parent=31 // pred_check
        %p495 = pneg %p248
      $region38: #{dense_graph_conv.3} parent=31 // pred_check_branch
        %497 = sbr.rel (%p495) target = $region40
      $region39: #{dense_graph_conv.3} parent=31 // pred_region
        %v498 = vld [vmem:[#allocation2] sm:$0xff]
        %v499 = vld [vmem:[#allocation2 + $0x8] sm:$0xff]
        %v500 = vld [vmem:[#allocation2 + $0x10] sm:$0xff]
        %v501 = vld [vmem:[#allocation2 + $0x18] sm:$0xff]
        %v502 = vld [vmem:[#allocation2 + $0x20] sm:$0xff]
        %v503 = vld [vmem:[#allocation2 + $0x28] sm:$0xff]
        %v504 = vld [vmem:[#allocation2 + $0x30] sm:$0xff]
        %v505 = vld [vmem:[#allocation2 + $0x38] sm:$0xff]
        %v506 = vld [vmem:[#allocation2 + $0x40] sm:$0xff]
        %v507 = vld [vmem:[#allocation2 + $0x48] sm:$0xff]
        %v508 = vld [vmem:[#allocation2 + $0x50] sm:$0xff]
        %v509 = vld [vmem:[#allocation2 + $0x58] sm:$0xff]
        %v510 = vld [vmem:[#allocation2 + $0x60] sm:$0xff]
        %v511 = vld [vmem:[#allocation2 + $0x68] sm:$0xff]
        %v512 = vld [vmem:[#allocation2 + $0x70] sm:$0xff]
        %v513 = vld [vmem:[#allocation2 + $0x78] sm:$0xff]
        %v514 = vld [vmem:[%s2] sm:$0x1]
        %v516 = vlaneseq
        %v517 = vshrl.u32 %v516, 7
        %v518 = vsub.s32 0, %v517
        %v519 = vrot.slane %v514, %v518
        %v521 = vadd.f32 %v498, %v519
        %v522 = vadd.f32 %v499, %v519
        %v523 = vadd.f32 %v500, %v519
        %v524 = vadd.f32 %v501, %v519
        %v525 = vadd.f32 %v502, %v519
        %v526 = vadd.f32 %v503, %v519
        %v527 = vadd.f32 %v504, %v519
        %v528 = vadd.f32 %v505, %v519
        %v529 = vadd.f32 %v506, %v519
        %v530 = vadd.f32 %v507, %v519
        %v531 = vadd.f32 %v508, %v519
        %v532 = vadd.f32 %v509, %v519
        %v533 = vadd.f32 %v510, %v519
        %v534 = vadd.f32 %v511, %v519
        %v535 = vadd.f32 %v512, %v519
        %v536 = vadd.f32 %v513, %v519
        %537 = vst [vmem:[%s246] sm:$0xff] %v521
        %538 = vst [vmem:[%s246 + $0x8] sm:$0xff] %v522
        %539 = vst [vmem:[%s246 + $0x10] sm:$0xff] %v523
        %540 = vst [vmem:[%s246 + $0x18] sm:$0xff] %v524
        %541 = vst [vmem:[%s246 + $0x20] sm:$0xff] %v525
        %542 = vst [vmem:[%s246 + $0x28] sm:$0xff] %v526
        %543 = vst [vmem:[%s246 + $0x30] sm:$0xff] %v527
        %544 = vst [vmem:[%s246 + $0x38] sm:$0xff] %v528
        %545 = vst [vmem:[%s246 + $0x40] sm:$0xff] %v529
        %546 = vst [vmem:[%s246 + $0x48] sm:$0xff] %v530
        %547 = vst [vmem:[%s246 + $0x50] sm:$0xff] %v531
        %548 = vst [vmem:[%s246 + $0x58] sm:$0xff] %v532
        %549 = vst [vmem:[%s246 + $0x60] sm:$0xff] %v533
        %550 = vst [vmem:[%s246 + $0x68] sm:$0xff] %v534
        %551 = vst [vmem:[%s246 + $0x70] sm:$0xff] %v535
        %552 = vst [vmem:[%s246 + $0x78] sm:$0xff] %v536
      $region40: #{dense_graph_conv.3} parent=31 // pred_fallthru
        _
      %s553 = smul.u32 16, %s20
      %p554 = scmp.lt.s32.totalorder %s19, 1
      %s555 = scalar_select %p554, %s19, 1
      %p556 = scmp.lt.s32.totalorder %s553, 15
      %s557 = scalar_select %p556, %s553, 15
      %s558 = smul.addr %s555, 16
      %s559 = sadd.s32 %s557, %s558
      %s560 = smul.addr %s559, 8
      %s561 = scalar_lea.vmem %s3, %s560
      // Predicated region
      $region41: #{dense_graph_conv.3} parent=31 // pred_check
        %p562 = pneg %p130
      $region42: #{dense_graph_conv.3} parent=31 // pred_check_branch
        %564 = sbr.rel (%p562) target = $region44
      $region43: #{dense_graph_conv.3} parent=31 // pred_region
        %s565 = smul.u32 16, %s20
      $region44: #{dense_graph_conv.3} parent=31 // pred_fallthru
        _
    $region32: #{dense_graph_conv.3} parent=5 // pred_fallthru
      _
    %p566 = scmp.le.s32.totalorder 2, %s9
    // Predicated region
    $region45: #{dense_graph_conv.3} parent=5 // pred_check
      %p567 = pneg %p566
    $region46: #{dense_graph_conv.3} parent=5 // pred_check_branch
      %569 = sbr.rel (%p567) target = $region48
    $region47: #{dense_graph_conv.3} parent=5 // pred_region
      %s570 = ssub.s32 %s9, 2
      // Predicated region
      $region49: #{dense_graph_conv.3} parent=47 // pred_check
        %p571 = pneg %p136
      $region50: #{dense_graph_conv.3} parent=47 // pred_check_branch
        %573 = sbr.rel (%p571) target = $region52
      $region51: #{dense_graph_conv.3} parent=47 // pred_region
        %s574 = smul.u32 16, %s23
        %p575 = scmp.lt.s32.totalorder %s22, 1
        %s576 = scalar_select %p575, %s22, 1
        %p577 = scmp.lt.s32.totalorder %s574, 15
        %s578 = scalar_select %p577, %s574, 15
        %s579 = smul.addr %s576, 16
        %s580 = sadd.s32 %s578, %s579
        %s581 = smul.addr %s580, 8
        %s582 = scalar_lea.vmem %s3, %s581
      $region52: #{dense_graph_conv.3} parent=47 // pred_fallthru
        _
    $region48: #{dense_graph_conv.3} parent=5 // pred_fallthru
      _
  $region6: #{dense_graph_conv.3} parent=0 // loop_footer
    %s13 = sadd.s32 1, %s9
  $region7: #{dense_graph_conv.3} parent=0 // loop_footer_branch
    %8 = sbr.rel target = $region3
  $region8: #{dense_graph_conv.3} parent=0 // loop_exit
    _

</llo_original>
